<compile_context>
chip_gen: v5e
topology: v5e:2x2
jax: 0.10.0
libtpu: 0.0.40
codegen_flags: <defaults>
</compile_context>

<pallas_src>
import functools

import jax
import jax.numpy as jnp
from jax import lax
from jax.experimental import pallas as pl
from jax.experimental.pallas import tpu as pltpu


def _angleproto_kernel(w_ref, b_ref, x_ref, loss_ref, prec_ref, *, num_bna):
    # x_ref: (N, M, D) full block in VMEM; w_ref/b_ref: (1, 1) scalars in SMEM.
    xv = x_ref[...]                      # native dtype (no f32 upcast for the MXU)
    a = xv[:, 1, :]                      # (N, D) anchors
    p = xv[:num_bna, 0, :]               # (B, D) positives (static slice)
    B = p.shape[0]
    N = a.shape[0]

    # Raw-dtype MXU matmul, f32 accumulation; contract last dims -> no transpose.
    raw = lax.dot_general(
        p, a,
        dimension_numbers=(((1,), (1,)), ((), ())),
        preferred_element_type=jnp.float32,
    )                                                                  # (B, N)

    # Post-matmul cosine normalization (rsqrt on the EUP), eps = 1e-8 as in
    # F.cosine_similarity, clamped per vector.
    eps2 = jnp.float32(1e-8) ** 2
    pf = p.astype(jnp.float32)
    af = a.astype(jnp.float32)
    inv_p = lax.rsqrt(jnp.maximum(jnp.sum(pf * pf, axis=-1, keepdims=True), eps2))  # (B, 1)
    inv_a = lax.rsqrt(jnp.maximum(jnp.sum(af * af, axis=-1, keepdims=True), eps2))  # (N, 1)
    cos = raw * inv_p * inv_a.T                                         # (B, N)

    logits = cos * w_ref[0, 0] + b_ref[0, 0]

    # Cross-entropy with label[i] = i (mean over rows), stable logsumexp.
    row_max = jnp.max(logits, axis=-1, keepdims=True)                              # (B, 1)
    lse = jnp.log(jnp.sum(jnp.exp(logits - row_max), axis=-1, keepdims=True)) + row_max
    row_idx = lax.broadcasted_iota(jnp.int32, logits.shape, 0)
    col_idx = lax.broadcasted_iota(jnp.int32, logits.shape, 1)
    diag_mask = row_idx == col_idx
    target_logit = jnp.sum(jnp.where(diag_mask, logits, 0.0), axis=-1, keepdims=True)
    loss_ref[0, 0] = jnp.sum(lse - target_logit) / jnp.float32(B)

    # Top-1 accuracy (percentage): prediction = first column attaining the row max
    # (argmax-first tie-breaking, matching torch argmax/topk), correct iff it equals
    # the row index. Done in f32 to keep the lane reduction on the well-trodden path.
    col_f = col_idx.astype(jnp.float32)
    is_max = logits >= row_max
    pred = jnp.min(jnp.where(is_max, col_f, jnp.float32(N)), axis=-1, keepdims=True)  # (B, 1)
    row_f = row_idx[:, :1].astype(jnp.float32)                                        # (B, 1)
    correct = (pred == row_f).astype(jnp.float32)
    prec_ref[0, 0] = 100.0 * jnp.sum(correct) / jnp.float32(B)


def angleproto_sasv_loss(x, num_bna, w1=10.0, b1=-5.0):
    """x: (N, M, D) with M >= 2; num_bna must be a static Python int.

    Returns (nloss, prec) as float32 scalars, matching LossFunction.forward.
    """
    assert x.shape[1] >= 2
    assert isinstance(num_bna, int) and 0 < num_bna <= x.shape[0]

    w = jnp.asarray(w1, jnp.float32).reshape(1, 1)
    b = jnp.asarray(b1, jnp.float32).reshape(1, 1)

    loss, prec = pl.pallas_call(
        functools.partial(_angleproto_kernel, num_bna=num_bna),
        out_shape=(
            jax.ShapeDtypeStruct((1, 1), jnp.float32),
            jax.ShapeDtypeStruct((1, 1), jnp.float32),
        ),
        in_specs=[
            pl.BlockSpec(memory_space=pltpu.MemorySpace.SMEM),  # w1 scalar
            pl.BlockSpec(memory_space=pltpu.MemorySpace.SMEM),  # b1 scalar
            pl.BlockSpec(memory_space=pltpu.MemorySpace.VMEM),  # x (N, M, D), full block
        ],
        out_specs=(
            pl.BlockSpec(memory_space=pltpu.MemorySpace.SMEM),
            pl.BlockSpec(memory_space=pltpu.MemorySpace.SMEM),
        ),
    )(w, b, x)
    return loss[0, 0], prec[0, 0]


if __name__ == "__main__":
    key = jax.random.PRNGKey(0)
    N, M, D = 16, 2, 128      # batch, utterances-per-speaker, embedding dim (lane-aligned)
    num_bna = 8
    x = jax.random.normal(key, (N, M, D), dtype=jnp.float32)

    nloss, prec = angleproto_sasv_loss(x, num_bna, w1=10.0, b1=-5.0)
    jax.block_until_ready((nloss, prec))
    print("KERNEL_OK")
</pallas_src>

<mosaic_0001>
module attributes {stable_mosaic.version = 11 : i64} {
  func.func @_angleproto_kernel(%arg0: memref<1x1xf32, #tpu.memory_space<smem>>, %arg1: memref<1x1xf32, #tpu.memory_space<smem>>, %arg2: memref<16x2x128xf32, #tpu.memory_space<vmem>>, %arg3: memref<1x1xf32, #tpu.memory_space<smem>>, %arg4: memref<1x1xf32, #tpu.memory_space<smem>>) attributes {dimension_semantics = [], scalar_prefetch = 0 : i64, scratch_operands = 0 : i64, tpu.core_type = #tpu.core_type<tc>} {
    %c0 = arith.constant 0 : index
    %c0_0 = arith.constant 0 : index
    %c0_1 = arith.constant 0 : index
    %0 = vector.load %arg2[%c0, %c0_0, %c0_1] : memref<16x2x128xf32, #tpu.memory_space<vmem>>, vector<16x2x128xf32>
    %1 = vector.extract_strided_slice %0 {offsets = [0, 1, 0], sizes = [16, 1, 128], strides = [1, 1, 1]} : vector<16x2x128xf32> to vector<16x1x128xf32>
    %2 = vector.shape_cast %1 : vector<16x1x128xf32> to vector<16x128xf32>
    %3 = vector.extract_strided_slice %0 {offsets = [0, 0, 0], sizes = [8, 1, 128], strides = [1, 1, 1]} : vector<16x2x128xf32> to vector<8x1x128xf32>
    %4 = vector.shape_cast %3 : vector<8x1x128xf32> to vector<8x128xf32>
    %cst = arith.constant dense<0.000000e+00> : vector<8x16xf32>
    %5 = tpu.matmul %4, %2, %cst {dimension_numbers = #tpu.dot_dimension_numbers<[1], [1], [0], [0], [0, 0, 1, 0], [], []>} : vector<8x128xf32>, vector<16x128xf32>, vector<8x16xf32> -> vector<8x16xf32>
    %cst_2 = arith.constant 9.99999993E-9 : f32
    %6 = arith.mulf %cst_2, %cst_2 : f32
    %7 = arith.mulf %4, %4 : vector<8x128xf32>
    %cst_3 = arith.constant dense<0.000000e+00> : vector<8xf32>
    %8 = vector.multi_reduction <add>, %7, %cst_3 [1] : vector<8x128xf32> to vector<8xf32>
    %9 = vector.shape_cast %8 : vector<8xf32> to vector<8x1xf32>
    %10 = vector.broadcast %6 : f32 to vector<8x1xf32>
    %11 = arith.maximumf %9, %10 : vector<8x1xf32>
    %12 = math.rsqrt %11 : vector<8x1xf32>
    %13 = arith.mulf %2, %2 : vector<16x128xf32>
    %cst_4 = arith.constant dense<0.000000e+00> : vector<16xf32>
    %14 = vector.multi_reduction <add>, %13, %cst_4 [1] : vector<16x128xf32> to vector<16xf32>
    %15 = vector.shape_cast %14 : vector<16xf32> to vector<16x1xf32>
    %16 = vector.broadcast %6 : f32 to vector<16x1xf32>
    %17 = arith.maximumf %15, %16 : vector<16x1xf32>
    %18 = math.rsqrt %17 : vector<16x1xf32>
    %19 = vector.broadcast %12 : vector<8x1xf32> to vector<8x16xf32>
    %20 = arith.mulf %5, %19 : vector<8x16xf32>
    %21 = tpu.transpose %18, [1, 0] : vector<16x1xf32> -> vector<1x16xf32>
    %22 = vector.broadcast %21 : vector<1x16xf32> to vector<8x16xf32>
    %23 = arith.mulf %20, %22 : vector<8x16xf32>
    %c0_5 = arith.constant 0 : index
    %c0_6 = arith.constant 0 : index
    %24 = memref.load %arg0[%c0_5, %c0_6] : memref<1x1xf32, #tpu.memory_space<smem>>
    %25 = vector.broadcast %24 : f32 to vector<8x16xf32>
    %26 = arith.mulf %23, %25 : vector<8x16xf32>
    %c0_7 = arith.constant 0 : index
    %c0_8 = arith.constant 0 : index
    %27 = memref.load %arg1[%c0_7, %c0_8] : memref<1x1xf32, #tpu.memory_space<smem>>
    %28 = vector.broadcast %27 : f32 to vector<8x16xf32>
    %29 = arith.addf %26, %28 : vector<8x16xf32>
    %cst_9 = arith.constant dense<0xFF800000> : vector<8xf32>
    %30 = vector.multi_reduction <maximumf>, %29, %cst_9 [1] : vector<8x16xf32> to vector<8xf32>
    %31 = vector.shape_cast %30 : vector<8xf32> to vector<8x1xf32>
    %32 = vector.broadcast %31 : vector<8x1xf32> to vector<8x16xf32>
    %33 = arith.subf %29, %32 : vector<8x16xf32>
    %34 = math.exp %33 : vector<8x16xf32>
    %cst_10 = arith.constant dense<0.000000e+00> : vector<8xf32>
    %35 = vector.multi_reduction <add>, %34, %cst_10 [1] : vector<8x16xf32> to vector<8xf32>
    %36 = vector.shape_cast %35 : vector<8xf32> to vector<8x1xf32>
    %37 = math.log %36 : vector<8x1xf32>
    %38 = arith.addf %37, %31 : vector<8x1xf32>
    %39 = tpu.iota {dimensions = array<i32: 0>} : vector<8x16xi32>
    %40 = tpu.iota {dimensions = array<i32: 1>} : vector<8x16xi32>
    %41 = arith.cmpi eq, %39, %40 : vector<8x16xi32>
    %cst_11 = arith.constant 0.000000e+00 : f32
    %42 = vector.broadcast %cst_11 : f32 to vector<8x16xf32>
    %43 = arith.select %41, %29, %42 : vector<8x16xi1>, vector<8x16xf32>
    %cst_12 = arith.constant dense<0.000000e+00> : vector<8xf32>
    %44 = vector.multi_reduction <add>, %43, %cst_12 [1] : vector<8x16xf32> to vector<8xf32>
    %45 = vector.shape_cast %44 : vector<8xf32> to vector<8x1xf32>
    %46 = arith.subf %38, %45 : vector<8x1xf32>
    %47 = vector.shape_cast %46 : vector<8x1xf32> to vector<1x8x1xf32>
    %cst_13 = arith.constant dense<0.000000e+00> : vector<1xf32>
    %48 = vector.multi_reduction <add>, %47, %cst_13 [1, 2] : vector<1x8x1xf32> to vector<1xf32>
    %49 = vector.shape_cast %48 : vector<1xf32> to vector<1x1x1xf32>
    %50 = vector.extract %49[0, 0, 0] : f32 from vector<1x1x1xf32>
    %cst_14 = arith.constant 8.000000e+00 : f32
    %51 = arith.divf %50, %cst_14 : f32
    %c0_15 = arith.constant 0 : index
    %c0_16 = arith.constant 0 : index
    %52 = memref.load %arg3[%c0_15, %c0_16] : memref<1x1xf32, #tpu.memory_space<smem>>
    memref.store %51, %arg3[%c0_15, %c0_16] : memref<1x1xf32, #tpu.memory_space<smem>>
    %53 = arith.sitofp %40 : vector<8x16xi32> to vector<8x16xf32>
    %54 = vector.broadcast %31 : vector<8x1xf32> to vector<8x16xf32>
    %55 = arith.cmpf oge, %29, %54 : vector<8x16xf32>
    %cst_17 = arith.constant 1.600000e+01 : f32
    %56 = vector.broadcast %cst_17 : f32 to vector<8x16xf32>
    %57 = arith.select %55, %53, %56 : vector<8x16xi1>, vector<8x16xf32>
    %cst_18 = arith.constant dense<0x7F800000> : vector<8xf32>
    %58 = vector.multi_reduction <minimumf>, %57, %cst_18 [1] : vector<8x16xf32> to vector<8xf32>
    %59 = vector.shape_cast %58 : vector<8xf32> to vector<8x1xf32>
    %60 = vector.extract_strided_slice %39 {offsets = [0, 0], sizes = [8, 1], strides = [1, 1]} : vector<8x16xi32> to vector<8x1xi32>
    %61 = arith.sitofp %60 : vector<8x1xi32> to vector<8x1xf32>
    %62 = arith.cmpf oeq, %59, %61 : vector<8x1xf32>
    %63 = arith.extui %62 : vector<8x1xi1> to vector<8x1xi32>
    %64 = arith.sitofp %63 : vector<8x1xi32> to vector<8x1xf32>
    %65 = vector.shape_cast %64 : vector<8x1xf32> to vector<1x8x1xf32>
    %cst_19 = arith.constant dense<0.000000e+00> : vector<1xf32>
    %66 = vector.multi_reduction <add>, %65, %cst_19 [1, 2] : vector<1x8x1xf32> to vector<1xf32>
    %67 = vector.shape_cast %66 : vector<1xf32> to vector<1x1x1xf32>
    %68 = vector.extract %67[0, 0, 0] : f32 from vector<1x1x1xf32>
    %cst_20 = arith.constant 1.000000e+02 : f32
    %69 = arith.mulf %cst_20, %68 : f32
    %cst_21 = arith.constant 8.000000e+00 : f32
    %70 = arith.divf %69, %cst_21 : f32
    %c0_22 = arith.constant 0 : index
    %c0_23 = arith.constant 0 : index
    %71 = memref.load %arg4[%c0_22, %c0_23] : memref<1x1xf32, #tpu.memory_space<smem>>
    memref.store %70, %arg4[%c0_22, %c0_23] : memref<1x1xf32, #tpu.memory_space<smem>>
    return
  }
}

</mosaic_0001>

<llo_original>
// kernel: tpu_custom_call.1
$region0: #{tpu_custom_call.1}
  #allocation0 [shape = 'u32[]', space=smem, size = 0x4, offset = 0x4, fixed_abs, tag = 'smem constant byte address 0x4 - core index']
  #allocation1 [shape = 'u32[72,128]{1,0:T(1,128)}', space=vmem, size = 0x9000, scoped, tag = 'internal scratch']
  #allocation2 [shape = 'f32[1,1]{1,0:T(1,128)S(6)}', space=smem, size = 0x200, scoped, tag = 'scoped memory for tpu_custom_call.1']
  #allocation3 [shape = 'f32[1,1]{1,0:T(1,128)S(6)}', space=smem, size = 0x200, scoped, tag = 'scoped memory for tpu_custom_call.1']
  %s0 = inlined_call_operand.<no memory space> [shape: f32[1,1], index: 0, kind: input, shape index: {}]
  %s1 = inlined_call_operand.<no memory space> [shape: f32[1,1], index: 1, kind: input, shape index: {}]
  %s2 = inlined_call_operand.hbm [shape: f32[16,2,128], index: 2, kind: input, shape index: {}]
  %s3 = inlined_call_operand.hbm [shape: f32[1,1], index: 3, kind: output, shape index: {0}]
  %s4 = inlined_call_operand.hbm [shape: f32[1,1], index: 4, kind: output, shape index: {1}]
  %5 = xla_tuple %s3, %s4
  %s6 = sld [smem:[#allocation0]]
  $region34: #{tpu_custom_call.1} parent=0
    _
  %s8 = ssub.s32 1, %s6
  %s9 = scalar_select 0, %s8, %s6
  %10 = sst [smem:[#allocation2]] %s0
  %11 = sst [smem:[#allocation3]] %s1
  $region1: #{tpu_custom_call.1} parent=0
    #allocation4 [shape = 'u8[16384]{0}', space=vmem, size = 0x4000, scoped, tag = 'input window, operand 2, single buffered']
    #allocation5 [shape = 's32[1]{0}', space=sflag, size = 0x4, scoped, tag = 'scoped memory for tpu_custom_call.1']
    #allocation6 [shape = 's32[1]{0}', space=sflag, size = 0x4, scoped, tag = 'scoped memory for tpu_custom_call.1']
    #allocation7 [shape = 'u8[512]{0}', space=smem, size = 0x200, scoped, tag = 'output window, operand 0, single buffered']
    #allocation8 [shape = 'u8[512]{0}', space=smem, size = 0x200, scoped, tag = 'output window, operand 1, single buffered']
    #allocation9 [shape = 's32[1]{0}', space=sflag, size = 0x4, scoped, tag = 'scoped memory for tpu_custom_call.1']
    %12 = vsyncpa [#allocation5], 0
    %13 = vsyncpa [#allocation6], 0
    %14 = vsyncpa [#allocation9], 0
    // Predicated region
    $region2: #{tpu_custom_call.1} parent=1 // pred_check
      _
    $region3: #{tpu_custom_call.1} parent=1 // pred_check_branch
      %16 = sbr.rel (0) target = $region5
    $region4: #{tpu_custom_call.1} parent=1 // pred_region
      _
    $region5: #{tpu_custom_call.1} parent=1 // pred_fallthru
      _
    // Predicated region
    $region6: #{tpu_custom_call.1} parent=1 // pred_check
      _
    $region7: #{tpu_custom_call.1} parent=1 // pred_check_branch
      %18 = sbr.rel (0) target = $region9
    $region8: #{tpu_custom_call.1} parent=1 // pred_region
      _
    $region9: #{tpu_custom_call.1} parent=1 // pred_fallthru
      _
    // Predicated region
    $region10: #{tpu_custom_call.1} parent=1 // pred_check
      _
    $region11: #{tpu_custom_call.1} parent=1 // pred_check_branch
      %20 = sbr.rel (0) target = $region13
    $region12: #{tpu_custom_call.1} parent=1 // pred_region
      %22 = vsyncadd [#allocation5], 0
      %s23 = sshll.u32 %s2, 4
      %s24 = int_to_ptr.hbm [resolvable:$true] %s23
      %s25 = sshll.u32 [#allocation4], 4
      %s26 = int_to_ptr.vmem [resolvable:$true] %s25
      %31 = dma.hbm_to_vmem [thread:$0]  %s24, 512, %s26, [#allocation5], 32, 32, 2
    $region13: #{tpu_custom_call.1} parent=1 // pred_fallthru
      _
    // Predicated region
    $region14: #{tpu_custom_call.1} parent=1 // pred_check
      _
    $region15: #{tpu_custom_call.1} parent=1 // pred_check_branch
      %33 = sbr.rel (0) target = $region17
    $region16: #{tpu_custom_call.1} parent=1 // pred_region
      %35 = dma.done [#allocation5], 512
    $region17: #{tpu_custom_call.1} parent=1 // pred_fallthru
      _
    %v36 = vld [vmem:[#allocation4] sm:$0x3]
    %v37 = vld [vmem:[#allocation4 + $0x2] sm:$0x3]
    %v38 = vld [vmem:[#allocation4 + $0x4] sm:$0x3]
    %v39 = vld [vmem:[#allocation4 + $0x6] sm:$0x3]
    %v40 = vld [vmem:[#allocation4 + $0x8] sm:$0x3]
    %v41 = vld [vmem:[#allocation4 + $0xa] sm:$0x3]
    %v42 = vld [vmem:[#allocation4 + $0xc] sm:$0x3]
    %v43 = vld [vmem:[#allocation4 + $0xe] sm:$0x3]
    %v44 = vld [vmem:[#allocation4 + $0x10] sm:$0x3]
    %v45 = vld [vmem:[#allocation4 + $0x12] sm:$0x3]
    %v46 = vld [vmem:[#allocation4 + $0x14] sm:$0x3]
    %v47 = vld [vmem:[#allocation4 + $0x16] sm:$0x3]
    %v48 = vld [vmem:[#allocation4 + $0x18] sm:$0x3]
    %v49 = vld [vmem:[#allocation4 + $0x1a] sm:$0x3]
    %v50 = vld [vmem:[#allocation4 + $0x1c] sm:$0x3]
    %v51 = vld [vmem:[#allocation4 + $0x1e] sm:$0x3]
    %v60 = vrot.slane %v37, 7
    %vm61 = vcmask 1041409
    %v62 = vsel %vm61, %v60, %v36
    %v63 = vrot.slane %v38, 6
    %vm64 = vcmask 1042434
    %v65 = vsel %vm64, %v63, %v62
    %v66 = vrot.slane %v39, 5
    %vm67 = vcmask 1043459
    %v68 = vsel %vm67, %v66, %v65
    %v69 = vrot.slane %v40, 4
    %vm70 = vcmask 1044484
    %v71 = vsel %vm70, %v69, %v68
    %v72 = vrot.slane %v41, 3
    %vm73 = vcmask 1045509
    %v74 = vsel %vm73, %v72, %v71
    %v75 = vrot.slane %v42, 2
    %vm76 = vcmask 1046534
    %v77 = vsel %vm76, %v75, %v74
    %v78 = vrot.slane %v43, 1
    %vm79 = vcmask 1047559
    %v80 = vsel %vm79, %v78, %v77
    %v90 = vrot.slane %v36, 1
    %v91 = vsel %vm61, %v37, %v90
    %v92 = vrot.slane %v38, 7
    %v93 = vsel %vm64, %v92, %v91
    %v94 = vrot.slane %v39, 6
    %v95 = vsel %vm67, %v94, %v93
    %v96 = vrot.slane %v40, 5
    %v97 = vsel %vm70, %v96, %v95
    %v98 = vrot.slane %v41, 4
    %v99 = vsel %vm73, %v98, %v97
    %v100 = vrot.slane %v42, 3
    %v101 = vsel %vm76, %v100, %v99
    %v102 = vrot.slane %v43, 2
    %v103 = vsel %vm79, %v102, %v101
    %v104 = vrot.slane %v44, 1
    %v105 = vsel %vm61, %v45, %v104
    %v106 = vrot.slane %v46, 7
    %v107 = vsel %vm64, %v106, %v105
    %v108 = vrot.slane %v47, 6
    %v109 = vsel %vm67, %v108, %v107
    %v110 = vrot.slane %v48, 5
    %v111 = vsel %vm70, %v110, %v109
    %v112 = vrot.slane %v49, 4
    %v113 = vsel %vm73, %v112, %v111
    %v114 = vrot.slane %v50, 3
    %v115 = vsel %vm76, %v114, %v113
    %v116 = vrot.slane %v51, 2
    %v117 = vsel %vm79, %v116, %v115
    %120 = vmatpush.xpose.msra.mxu0 0.0
    %121 = vmatpush.xpose.msra.mxu0 0.0
    %122 = vmatpush.xpose.msra.mxu0 0.0
    %123 = vmatpush.xpose.msra.mxu0 0.0
    %124 = vmatpush.xpose.msra.mxu0 0.0
    %125 = vmatpush.xpose.msra.mxu0 0.0
    %126 = vmatpush.xpose.msra.mxu0 0.0
    %127 = vmatpush.xpose.msra.mxu0 0.0
    %128 = vmatpush.xpose.msra.mxu0 0.0
    %129 = vmatpush.xpose.msra.mxu0 0.0
    %130 = vmatpush.xpose.msra.mxu0 0.0
    %131 = vmatpush.xpose.msra.mxu0 0.0
    %132 = vmatpush.xpose.msra.mxu0 0.0
    %133 = vmatpush.xpose.msra.mxu0 0.0
    %134 = vmatpush.xpose.msra.mxu0 %v117
    %135 = vmatpush.xpose.msra.mxu0 %v103
    %136 = vmatmul.f32.gmra.mxu0 %v80
    %v137 = vpop.f32.mrf.mxu0
    %v138 = vadd.f32 0.0, %v137
    %139 = vdwg.mxu0
    %v140 = vmul.f32 %v36, %v36
    %v141 = vmul.f32 %v37, %v37
    %v142 = vmul.f32 %v38, %v38
    %v143 = vmul.f32 %v39, %v39
    %v144 = vmul.f32 %v40, %v40
    %v145 = vmul.f32 %v41, %v41
    %v146 = vmul.f32 %v42, %v42
    %v147 = vmul.f32 %v43, %v43
    %v156 = vrot.slane %v141, 7
    %v157 = vsel %vm61, %v156, %v140
    %v158 = vrot.slane %v142, 6
    %v159 = vsel %vm64, %v158, %v157
    %v160 = vrot.slane %v143, 5
    %v161 = vsel %vm67, %v160, %v159
    %v162 = vrot.slane %v144, 4
    %v163 = vsel %vm70, %v162, %v161
    %v164 = vrot.slane %v145, 3
    %v165 = vsel %vm73, %v164, %v163
    %v166 = vrot.slane %v146, 2
    %v167 = vsel %vm76, %v166, %v165
    %v168 = vrot.slane %v147, 1
    %v169 = vsel %vm79, %v168, %v167
    %171 = vadd.xlane.f32.xlu0 %v169
    %v172 = vpop.xlane.xlu0 %171
    %v173 = vmax.f32 %v172, 1e-16
    %v174 = vrsqrt.pop %v173
    %v175 = vmul.f32 %v174, %v173
    %v176 = vmul.f32 %v175, %v174
    %v177 = vmul.f32 0.5, %v176
    %v178 = vsub.f32 1.5, %v177
    %v179 = vmul.f32 %v174, %v178
    %vm180 = vweird.f32 %v173
    %vm181 = vweird.f32 %v174
    %vm182 = vmor %vm180, %vm181
    %v183 = vsel %vm182, %v174, %v179
    %v184 = vmul.f32 %v44, %v44
    %v185 = vmul.f32 %v45, %v45
    %v186 = vmul.f32 %v46, %v46
    %v187 = vmul.f32 %v47, %v47
    %v188 = vmul.f32 %v48, %v48
    %v189 = vmul.f32 %v49, %v49
    %v190 = vmul.f32 %v50, %v50
    %v191 = vmul.f32 %v51, %v51
    %v200 = vsel %vm64, %v156, %v140
    %v201 = vsel %vm67, %v158, %v200
    %v202 = vsel %vm70, %v160, %v201
    %v203 = vsel %vm73, %v162, %v202
    %v204 = vsel %vm76, %v164, %v203
    %v205 = vsel %vm79, %v166, %v204
    %v206 = vsel %vm61, %v184, %v168
    %v207 = vrot.slane %v185, 7
    %v208 = vsel %vm64, %v207, %v206
    %v209 = vrot.slane %v186, 6
    %v210 = vsel %vm67, %v209, %v208
    %v211 = vrot.slane %v187, 5
    %v212 = vsel %vm70, %v211, %v210
    %v213 = vrot.slane %v188, 4
    %v214 = vsel %vm73, %v213, %v212
    %v215 = vrot.slane %v189, 3
    %v216 = vsel %vm76, %v215, %v214
    %v217 = vrot.slane %v190, 2
    %v218 = vsel %vm79, %v217, %v216
    %v219 = vrot.slane %v191, 1
    %vm223 = vcmask 1047553
    %v224 = vsel %vm223, %v205, 0.0
    %225 = vadd.xlane.f32.xlu0 %v224
    %v226 = vpop.xlane.xlu0 %225
    %227 = vadd.xlane.f32.xlu0 %v218
    %v228 = vpop.xlane.xlu0 %227
    %vm229 = vcmask 1040384
    %v230 = vsel %vm229, %v219, 0.0
    %231 = vadd.xlane.f32.xlu0 %v230
    %v232 = vpop.xlane.xlu0 %231
    %v233 = vmax.f32 %v226, 1e-16
    %v234 = vmax.f32 %v228, 1e-16
    %v235 = vmax.f32 %v232, 1e-16
    %v236 = vrsqrt.pop %v233
    %v237 = vmul.f32 %v236, %v233
    %v238 = vmul.f32 %v237, %v236
    %v239 = vmul.f32 0.5, %v238
    %v240 = vsub.f32 1.5, %v239
    %v241 = vmul.f32 %v236, %v240
    %vm242 = vweird.f32 %v233
    %vm243 = vweird.f32 %v236
    %vm244 = vmor %vm242, %vm243
    %v245 = vsel %vm244, %v236, %v241
    %v246 = vrsqrt.pop %v234
    %v247 = vmul.f32 %v246, %v234
    %v248 = vmul.f32 %v247, %v246
    %v249 = vmul.f32 0.5, %v248
    %v250 = vsub.f32 1.5, %v249
    %v251 = vmul.f32 %v246, %v250
    %vm252 = vweird.f32 %v234
    %vm253 = vweird.f32 %v246
    %vm254 = vmor %vm252, %vm253
    %v255 = vsel %vm254, %v246, %v251
    %v256 = vrsqrt.pop %v235
    %v257 = vmul.f32 %v256, %v235
    %v258 = vmul.f32 %v257, %v256
    %v259 = vmul.f32 0.5, %v258
    %v260 = vsub.f32 1.5, %v259
    %v261 = vmul.f32 %v256, %v260
    %vm262 = vweird.f32 %v235
    %vm263 = vweird.f32 %v256
    %vm264 = vmor %vm262, %vm263
    %v265 = vsel %vm264, %v256, %v261
    %v266 = vmul.f32 %v138, %v183
    %vm270 = vcmask 1046528
    %v271 = vrot.slane %v245, 1
    %v272 = vrot.slane %v255, 1
    %v273 = vsel %vm270, %v271, %v272
    %v274 = vrot.slane %v265, 1
    %v275 = vsel %vm270, %v272, %v274
    %278 = vxpose.xlu0.b32.start [1/16] %v273, 128
    %279 = vxpose.xlu0.b32.cont [2/16] %v275, 128
    %280 = vxpose.xlu0.b32.cont [3/16] 0.0, 128
    %281 = vxpose.xlu0.b32.cont [4/16] 0.0, 128
    %282 = vxpose.xlu0.b32.cont [5/16] 0.0, 128
    %283 = vxpose.xlu0.b32.cont [6/16] 0.0, 128
    %284 = vxpose.xlu0.b32.cont [7/16] 0.0, 128
    %285 = vxpose.xlu0.b32.cont [8/16] 0.0, 128
    %286 = vxpose.xlu0.b32.cont [9/16] 0.0, 128
    %287 = vxpose.xlu0.b32.cont [10/16] 0.0, 128
    %288 = vxpose.xlu0.b32.cont [11/16] 0.0, 128
    %289 = vxpose.xlu0.b32.cont [12/16] 0.0, 128
    %290 = vxpose.xlu0.b32.cont [13/16] 0.0, 128
    %291 = vxpose.xlu0.b32.cont [14/16] 0.0, 128
    %292 = vxpose.xlu0.b32.cont [15/16] 0.0, 128
    %293 = vxpose.xlu0.b32.end [16/16] 0.0, 128
    %v294 = vpop.trf.xlu0
    %v295 = vpop.trf.xlu0
    %v296 = vpop.trf.xlu0
    %v297 = vpop.trf.xlu0
    %v298 = vpop.trf.xlu0
    %v299 = vpop.trf.xlu0
    %v300 = vpop.trf.xlu0
    %v301 = vpop.trf.xlu0
    %v302 = vpop.trf.xlu0
    %v303 = vpop.trf.xlu0
    %v304 = vpop.trf.xlu0
    %v305 = vpop.trf.xlu0
    %v306 = vpop.trf.xlu0
    %v307 = vpop.trf.xlu0
    %v308 = vpop.trf.xlu0
    %v309 = vpop.trf.xlu0
    %v310 = vperm.slane %v294, 0
    %v311 = vmul.f32 %v266, %v310
    %s312 = sld [smem:[#allocation2]]
    %v313 = vstv %s312
    %v314 = vmul.f32 %v311, %v313
    %s315 = sld [smem:[#allocation3]]
    %v316 = vstv %s315
    %v317 = vadd.f32 %v314, %v316
    %vm318 = vcmask 130048
    %v319 = vsel %vm318, %v317, -inf
    %320 = vmax.xlane.f32.xlu0 %v319
    %v321 = vpop.xlane.xlu0 %320
    %v322 = vsub.f32 %v317, %v321
    %v323 = vmul.f32 %v322, 1.442695
    %v324 = vpow.pop %v323
    %v325 = vsel %vm318, %v324, 0.0
    %326 = vadd.xlane.f32.xlu0 %v325
    %v327 = vpop.xlane.xlu0 %326
    %v328 = vlog2.pop %v327
    %v329 = vmul.f32 %v328, 0.6931472
    %v330 = vadd.f32 %v329, %v321
    %v331 = vlaneseq
    %v332 = vshrl.u32 %v331, 7
    %v333 = vlaneseq
    %v334 = vand.u32 %v333, 127
    %vm335 = vcmp.eq.s32.totalorder %v332, %v334
    %v336 = vsel %vm335, %v317, 0.0
    %v337 = vsel %vm318, %v336, 0.0
    %338 = vadd.xlane.f32.xlu0 %v337
    %v339 = vpop.xlane.xlu0 %338
    %v340 = vsub.f32 %v330, %v339
    %vm341 = vcmask 7168
    %v342 = vsel %vm341, %v340, 0.0
    %343 = vadd.xlane.f32.xlu0 %v342
    %v344 = vpop.xlane.xlu0 %343
    %v345 = vrot.slane %v344, 4
    %v346 = vadd.f32 %v344, %v345
    %v347 = vrot.slane %v346, 2
    %v348 = vadd.f32 %v346, %v347
    %v349 = vrot.slane %v348, 1
    %v350 = vadd.f32 %v348, %v349
    %s351 = vtos %v350
    %v352 = vrcp.pop 8.0
    %v353 = vmul.f32 8.0, %v352
    %v354 = vsub.f32 1.0, %v353
    %v355 = vmul.f32 %v352, %v354
    %v356 = vadd.f32 %v352, %v355
    %vm357 = vweird.f32 %v352
    %v358 = vsel %vm357, %v352, %v356
    %s359 = vtos %v358
    %s360 = smul.f32 %s351, %s359
    %s361 = scalar_lea.smem [#allocation7], 0
    %362 = sst [smem:[%s361]] %s360
    %v363 = vcvt.s32.f32 %v334
    %vm364 = vcmp.ge.f32.partialorder %v317, %v321
    %v365 = vsel %vm364, %v363, 16.0
    %v366 = vsel %vm318, %v365, inf
    %367 = vmin.xlane.f32.xlu0 %v366
    %v368 = vpop.xlane.xlu0 %367
    %v369 = vcvt.s32.f32 %v332
    %vm370 = vcmp.eq.f32.partialorder %v368, %v369
    %v371 = vsel %vm370, 1, 0
    %v372 = vcvt.s32.f32 %v371
    %v373 = vsel %vm341, %v372, 0.0
    %374 = vadd.xlane.f32.xlu0 %v373
    %v375 = vpop.xlane.xlu0 %374
    %v376 = vrot.slane %v375, 4
    %v377 = vadd.f32 %v375, %v376
    %v378 = vrot.slane %v377, 2
    %v379 = vadd.f32 %v377, %v378
    %v380 = vrot.slane %v379, 1
    %v381 = vadd.f32 %v379, %v380
    %s382 = vtos %v381
    %s383 = smul.f32 %s382, 100.0
    %v384 = vrcp.pop 8.0
    %v385 = vmul.f32 8.0, %v384
    %v386 = vsub.f32 1.0, %v385
    %v387 = vmul.f32 %v384, %v386
    %v388 = vadd.f32 %v384, %v387
    %vm389 = vweird.f32 %v384
    %v390 = vsel %vm389, %v384, %v388
    %s391 = vtos %v390
    %s392 = smul.f32 %s383, %s391
    %s393 = scalar_lea.smem [#allocation8], 0
    %394 = sst [smem:[%s393]] %s392
    // Predicated region
    $region18: #{tpu_custom_call.1} parent=1 // pred_check
      _
    $region19: #{tpu_custom_call.1} parent=1 // pred_check_branch
      %396 = sbr.rel (0) target = $region21
    $region20: #{tpu_custom_call.1} parent=1 // pred_region
      %398 = vsyncadd [#allocation6], 0
      %s400 = sshll.u32 %s3, 4
      %s401 = int_to_ptr.hbm [resolvable:$true] %s400
      %403 = dma.smem_to_hbm [#allocation7], 16, %s401, [#allocation6]
    $region21: #{tpu_custom_call.1} parent=1 // pred_fallthru
      _
    // Predicated region
    $region22: #{tpu_custom_call.1} parent=1 // pred_check
      _
    $region23: #{tpu_custom_call.1} parent=1 // pred_check_branch
      %405 = sbr.rel (0) target = $region25
    $region24: #{tpu_custom_call.1} parent=1 // pred_region
      %407 = vsyncadd [#allocation9], 0
      %s409 = sshll.u32 %s4, 4
      %s410 = int_to_ptr.hbm [resolvable:$true] %s409
      %412 = dma.smem_to_hbm [#allocation8], 16, %s410, [#allocation9]
    $region25: #{tpu_custom_call.1} parent=1 // pred_fallthru
      _
    // Predicated region
    $region26: #{tpu_custom_call.1} parent=1 // pred_check
      _
    $region27: #{tpu_custom_call.1} parent=1 // pred_check_branch
      %414 = sbr.rel (0) target = $region29
    $region28: #{tpu_custom_call.1} parent=1 // pred_region
      %416 = dma.done [#allocation6], 16
    $region29: #{tpu_custom_call.1} parent=1 // pred_fallthru
      _
    // Predicated region
    $region30: #{tpu_custom_call.1} parent=1 // pred_check
      _
    $region31: #{tpu_custom_call.1} parent=1 // pred_check_branch
      %418 = sbr.rel (0) target = $region33
    $region32: #{tpu_custom_call.1} parent=1 // pred_region
      %420 = dma.done [#allocation9], 16
    $region33: #{tpu_custom_call.1} parent=1 // pred_fallthru
      _
    %421 = sfence
    %422 = vsyncpa [#allocation5], 1
    %423 = vsyncpa [#allocation6], 1
    %424 = vsyncpa [#allocation9], 1

</llo_original>
